<compile_context>
chip_gen: v7x
topology: tpu7x:2x2x1
jax: 0.10.0
libtpu: 0.0.40
codegen_flags: <defaults>
</compile_context>

<pallas_src>
import math
import functools

import jax
import jax.numpy as jnp
from jax.experimental import pallas as pl
from jax.experimental.pallas import tpu as pltpu

HIGHEST = jax.lax.Precision.HIGHEST


def _round_up(x, m):
    return (x + m - 1) // m * m


def _vmem_capacity_bytes():
    """Physical VMEM of the current TPU generation (conservative fallback)."""
    try:
        return int(pltpu.get_tpu_info().vmem_capacity_bytes)
    except Exception:
        return 64 * 1024 * 1024  # v7x per-TensorCore VMEM (smallest of v5e/v6e/v7x)


def _modconv_kernel(x_ref, w_ref, s_ref, d_ref, bias_ref, o_ref, *, mxu_dtype):
    """One grid step == one (batch element, spatial band).

    x_ref   : (1, tile_hw, Kp)   packed im2col patches for this band
    w_ref   : (Kp, fout_p)       equal-lr-scaled conv weight, packed K layout
    s_ref   : (1, Kp, 1)         per-sample style, repeated per tap (packed K)
    d_ref   : (1, 1, fout_p)     per-sample demodulation factor (hoisted)
    bias_ref: (1, fout_p)        conv bias
    o_ref   : (1, tile_hw, fout_p)
    """
    # purely elementwise weight modulation (demod reduction hoisted to wrapper)
    wm = (w_ref[...] * s_ref[0] * d_ref[0]).astype(mxu_dtype)      # (Kp, fout_p)
    # one MXU matmul per band, f32 accumulation
    acc = jnp.dot(x_ref[0].astype(mxu_dtype), wm,
                  preferred_element_type=jnp.float32)              # (tile_hw, fout_p)
    o_ref[0] = (acc + bias_ref[...]).astype(o_ref.dtype)


@functools.partial(jax.jit,
                   static_argnames=("kernel_size", "padding_type", "demodulate"))
def modulated_conv2d(x_nchw, latent, weight, bias, mlp_w, mlp_b, *,
                     kernel_size, padding_type="zero", demodulate=None):
    """Pallas forward matching ModulatedConv2d.forward."""
    B, fin, H, W = x_nchw.shape
    fout = weight.shape[0]
    latent_dim = mlp_w.shape[1]
    k = kernel_size
    p = k // 2
    if demodulate is None:            # module: demudulate = (kernel_size != 1)
        demodulate = (k != 1)

    out_dtype = x_nchw.dtype
    mxu_dtype = jnp.bfloat16 if out_dtype == jnp.bfloat16 else jnp.float32

    Kfull = k * k * fin
    Kp = _round_up(Kfull, 128)        # packed, lane-dense contraction dim
    fout_p = _round_up(fout, 128)
    HW = H * W

    # ---- style MLP (EqualLinear), hoisted: one XLA matmul for the batch ----
    s = (jnp.dot(latent.astype(jnp.float32),
                 (mlp_w.astype(jnp.float32) * math.sqrt(2.0 / latent_dim)).T,
                 precision=HIGHEST)
         + mlp_b.astype(jnp.float32))                                 # (B, fin)

    # ---- equal-lr conv weight, packed (tap-major, channel-minor) K layout --
    w_eq = weight.astype(jnp.float32) * math.sqrt(2.0 / (fin * k * k))  # (fout,fin,k,k)
    w_packed = jnp.transpose(w_eq, (2, 3, 1, 0)).reshape(Kfull, fout)
    w_packed = jnp.pad(w_packed, ((0, Kp - Kfull), (0, fout_p - fout)))

    # ---- hoisted demodulation factor (separable: one small XLA matmul) -----
    if demodulate:
        W2 = jnp.sum(w_eq * w_eq, axis=(2, 3))                          # (fout, fin)
        d = jax.lax.rsqrt(jnp.dot(s * s, W2.T, precision=HIGHEST) + 1e-5)  # (B, fout)
    else:
        d = jnp.ones((B, fout), jnp.float32)
    d3 = jnp.pad(d, ((0, 0), (0, fout_p - fout))).reshape(B, 1, fout_p)

    # ---- per-sample style repeated per tap, into the packed K layout -------
    s_packed = jnp.tile(s, (1, k * k))                                  # (B, k*k*fin)
    s3 = jnp.pad(s_packed, ((0, 0), (0, Kp - Kfull))).reshape(B, Kp, 1)

    bias2 = jnp.pad(bias.reshape(1, fout).astype(jnp.float32),
                    ((0, 0), (0, fout_p - fout)))

    # ---- spatial padding + packed im2col (lane-dense K) --------------------
    x_nhwc = jnp.transpose(x_nchw, (0, 2, 3, 1))
    if p > 0:
        mode = "reflect" if padding_type == "reflect" else "constant"
        x_pad = jnp.pad(x_nhwc, ((0, 0), (p, p), (p, p), (0, 0)), mode=mode)
    else:
        x_pad = x_nhwc
    slabs = [x_pad[:, ki:ki + H, kj:kj + W, :]
             for ki in range(k) for kj in range(k)]
    patches = jnp.concatenate(slabs, axis=-1).reshape(B, HW, Kfull)

    # ---- shape/generation-aware band tile & VMEM limit ---------------------
    itemsize = jnp.dtype(out_dtype).itemsize
    phys_vmem = _vmem_capacity_bytes()

    def _vmem_need(tile):
        return (2 * tile * Kp * itemsize                 # patches (double-buffered)
                + 2 * tile * fout_p * itemsize           # output blocks
                + 2 * (Kp * fout_p + Kp + 2 * fout_p) * 4  # w, s, d, bias blocks
                + Kp * fout_p * jnp.dtype(mxu_dtype).itemsize)  # modulated-weight temp

    budget = int(0.70 * phys_vmem)
    tile_hw = 8
    for cand in (2048, 1024, 512, 256, 128, 64, 32, 16, 8):
        if _vmem_need(cand) + (2 << 20) <= budget:
            tile_hw = cand
            break
    tile_hw = min(tile_hw, _round_up(HW, 8))
    n_bands = pl.cdiv(HW, tile_hw)
    HW_pad = n_bands * tile_hw
    vmem_limit = min(int(0.85 * phys_vmem),
                     max(_vmem_need(tile_hw) + (8 << 20), 32 << 20))

    patches = jnp.pad(patches, ((0, 0), (0, HW_pad - HW), (0, Kp - Kfull)))

    kernel = functools.partial(_modconv_kernel, mxu_dtype=mxu_dtype)

    out = pl.pallas_call(
        kernel,
        out_shape=jax.ShapeDtypeStruct((B, HW_pad, fout_p), out_dtype),
        grid_spec=pltpu.PrefetchScalarGridSpec(
            num_scalar_prefetch=0,
            grid=(B, n_bands),
            in_specs=[
                pl.BlockSpec((1, tile_hw, Kp), lambda b, t: (b, t, 0)),
                pl.BlockSpec((Kp, fout_p), lambda b, t: (0, 0)),
                pl.BlockSpec((1, Kp, 1), lambda b, t: (b, 0, 0)),
                pl.BlockSpec((1, 1, fout_p), lambda b, t: (b, 0, 0)),
                pl.BlockSpec((1, fout_p), lambda b, t: (0, 0)),
            ],
            out_specs=pl.BlockSpec((1, tile_hw, fout_p), lambda b, t: (b, t, 0)),
        ),
        compiler_params=pltpu.CompilerParams(
            dimension_semantics=("parallel", "parallel"),
            vmem_limit_bytes=vmem_limit),
    )(patches, w_packed, s3, d3, bias2)

    out = out[:, :HW, :fout].reshape(B, H, W, fout)
    return jnp.transpose(out, (0, 3, 1, 2))                            # NCHW


def reference(x, latent, weight, bias, mlp_w, mlp_b, kernel_size,
              padding_type="zero", demodulate=None):
    """Pure-JAX reference mirroring the PyTorch forward exactly."""
    B, fin, H, W = x.shape
    fout = weight.shape[0]
    k = kernel_size
    p = k // 2
    latent_dim = mlp_w.shape[1]
    if demodulate is None:
        demodulate = (k != 1)

    w = weight * math.sqrt(2.0 / (fin * k * k))                         # equal-lr
    s = jnp.dot(latent, (mlp_w * math.sqrt(2.0 / latent_dim)).T,
                precision=HIGHEST) + mlp_b                              # (B, fin)
    wm = s[:, None, :, None, None] * w[None]                            # (B,fout,fin,k,k)
    if demodulate:
        d = jax.lax.rsqrt(jnp.sum(wm ** 2, axis=(2, 3, 4)) + 1e-5)
        wm = wm * d[:, :, None, None, None]

    if p > 0:
        mode = "reflect" if padding_type == "reflect" else "constant"
        xp = jnp.pad(x, ((0, 0), (0, 0), (p, p), (p, p)), mode=mode)
    else:
        xp = x
    outs = []
    for b in range(B):
        o = jax.lax.conv_general_dilated(
            xp[b:b + 1], wm[b], window_strides=(1, 1), padding="VALID",
            dimension_numbers=("NCHW", "OIHW", "NCHW"), precision=HIGHEST)
        outs.append(o)
    return jnp.concatenate(outs, axis=0) + bias.reshape(1, fout, 1, 1)


if __name__ == "__main__":
    def run_case(B, fin, fout, K, H, W, latent_dim, padding_type, seed):
        key = jax.random.PRNGKey(seed)
        k1, k2, kx, kl = jax.random.split(key, 4)

        # deterministic parameter init matching __init__:
        #   self.weight.data.normal_(); self.bias.data.zero_()
        #   EqualLinear: linear.weight.data.normal_(); linear.bias.data.zero_()
        weight = jax.random.normal(k1, (fout, fin, K, K), jnp.float32)
        bias = jnp.zeros((1, fout, 1, 1), jnp.float32)
        mlp_w = jax.random.normal(k2, (fin, latent_dim), jnp.float32)
        mlp_b = jnp.zeros((fin,), jnp.float32)
        x = jax.random.normal(kx, (B, fin, H, W), jnp.float32)
        latent = jax.random.normal(kl, (B, latent_dim), jnp.float32)

        out = modulated_conv2d(x, latent, weight, bias, mlp_w, mlp_b,
                               kernel_size=K, padding_type=padding_type)
        out = jax.block_until_ready(out)
        ref = reference(x, latent, weight, bias, mlp_w, mlp_b, K, padding_type)
        assert out.shape == (B, fout, H, W)
        err = float(jnp.max(jnp.abs(out - ref)))
        assert jnp.allclose(out, ref, atol=1e-3, rtol=1e-3), \
            f"case K={K} pad={padding_type}: max abs err {err}"

    # shipped small-shape config: 3x3, zero pad, demodulated
    run_case(B=2, fin=4, fout=8, K=3, H=16, W=16, latent_dim=32,
             padding_type="zero", seed=0)
    # 1x1 conv (demodulate=False branch of the module)
    run_case(B=2, fin=4, fout=8, K=1, H=16, W=16, latent_dim=32,
             padding_type="zero", seed=1)
    # 3x3 with reflection padding (padding_type='reflect' branch)
    run_case(B=2, fin=4, fout=8, K=3, H=16, W=16, latent_dim=32,
             padding_type="reflect", seed=2)

    print("KERNEL_OK")
</pallas_src>

<mosaic_0001>
module attributes {stable_mosaic.version = 11 : i64} {
  func.func @_modconv_kernel(%arg0: i32, %arg1: i32, %arg2: memref<1x256x128xf32, #tpu.memory_space<vmem>>, %arg3: memref<128x128xf32, #tpu.memory_space<vmem>>, %arg4: memref<1x128x1xf32, #tpu.memory_space<vmem>>, %arg5: memref<1x1x128xf32, #tpu.memory_space<vmem>>, %arg6: memref<1x128xf32, #tpu.memory_space<vmem>>, %arg7: memref<1x256x128xf32, #tpu.memory_space<vmem>>) attributes {dimension_semantics = [#tpu.dimension_semantics<parallel>, #tpu.dimension_semantics<parallel>], iteration_bounds = array<i64: 2, 1>, scalar_prefetch = 0 : i64, scratch_operands = 0 : i64, tpu.core_type = #tpu.core_type<tc>, window_params = [{transform_indices = @transform_0, window_bounds = array<i64: 1, 256, 128>}, {pipeline_mode = #tpu.pipeline_mode<synchronous>, transform_indices = @transform_1, window_bounds = array<i64: 128, 128>}, {transform_indices = @transform_2, window_bounds = array<i64: 1, 128, 1>}, {transform_indices = @transform_3, window_bounds = array<i64: 1, 1, 128>}, {pipeline_mode = #tpu.pipeline_mode<synchronous>, transform_indices = @transform_4, window_bounds = array<i64: 1, 128>}, {transform_indices = @transform_5, window_bounds = array<i64: 1, 256, 128>}]} {
    %c0 = arith.constant 0 : index
    %c0_0 = arith.constant 0 : index
    %0 = vector.load %arg3[%c0, %c0_0] : memref<128x128xf32, #tpu.memory_space<vmem>>, vector<128x128xf32>
    %c0_1 = arith.constant 0 : index
    %c0_2 = arith.constant 0 : index
    %c0_3 = arith.constant 0 : index
    %1 = vector.load %arg4[%c0_1, %c0_2, %c0_3] : memref<1x128x1xf32, #tpu.memory_space<vmem>>, vector<1x128x1xf32>
    %2 = vector.shape_cast %1 : vector<1x128x1xf32> to vector<128x1xf32>
    %3 = vector.broadcast %2 : vector<128x1xf32> to vector<128x128xf32>
    %4 = arith.mulf %0, %3 : vector<128x128xf32>
    %c0_4 = arith.constant 0 : index
    %c0_5 = arith.constant 0 : index
    %c0_6 = arith.constant 0 : index
    %5 = vector.load %arg5[%c0_4, %c0_5, %c0_6] : memref<1x1x128xf32, #tpu.memory_space<vmem>>, vector<1x1x128xf32>
    %6 = vector.shape_cast %5 : vector<1x1x128xf32> to vector<1x128xf32>
    %7 = vector.broadcast %6 : vector<1x128xf32> to vector<128x128xf32>
    %8 = arith.mulf %4, %7 : vector<128x128xf32>
    %c0_7 = arith.constant 0 : index
    %c0_8 = arith.constant 0 : index
    %c0_9 = arith.constant 0 : index
    %9 = vector.load %arg2[%c0_7, %c0_8, %c0_9] : memref<1x256x128xf32, #tpu.memory_space<vmem>>, vector<1x256x128xf32>
    %10 = vector.shape_cast %9 : vector<1x256x128xf32> to vector<256x128xf32>
    %cst = arith.constant dense<0.000000e+00> : vector<256x128xf32>
    %11 = tpu.matmul %10, %8, %cst {dimension_numbers = #tpu.dot_dimension_numbers<[1], [0], [0], [1], [0, 0, 1, 1], [], []>} : vector<256x128xf32>, vector<128x128xf32>, vector<256x128xf32> -> vector<256x128xf32>
    %c0_10 = arith.constant 0 : index
    %c0_11 = arith.constant 0 : index
    %12 = vector.load %arg6[%c0_10, %c0_11] : memref<1x128xf32, #tpu.memory_space<vmem>>, vector<1x128xf32>
    %13 = vector.broadcast %12 : vector<1x128xf32> to vector<256x128xf32>
    %14 = arith.addf %11, %13 : vector<256x128xf32>
    %c0_12 = arith.constant 0 : index
    %c0_13 = arith.constant 0 : index
    %c0_14 = arith.constant 0 : index
    %15 = vector.load %arg7[%c0_12, %c0_13, %c0_14] : memref<1x256x128xf32, #tpu.memory_space<vmem>>, vector<1x256x128xf32>
    %16 = vector.shape_cast %15 : vector<1x256x128xf32> to vector<256x128xf32>
    %17 = vector.shape_cast %14 : vector<256x128xf32> to vector<1x256x128xf32>
    tpu.vector_store %arg7[%c0_12, %c0_13, %c0_14], %17 {strides = array<i32>} : memref<1x256x128xf32, #tpu.memory_space<vmem>>, vector<1x256x128xf32>,
    return
  }
  func.func @transform_0(%arg0: i32, %arg1: i32) -> (i32, i32, i32) {
    %c0_i32 = arith.constant 0 : i32
    %c0_i32_0 = arith.constant 0 : i32
    return %arg0, %arg1, %c0_i32 : i32, i32, i32
  }
  func.func @transform_1(%arg0: i32, %arg1: i32) -> (i32, i32) {
    %c0_i32 = arith.constant 0 : i32
    %c0_i32_0 = arith.constant 0 : i32
    %c0_i32_1 = arith.constant 0 : i32
    return %c0_i32, %c0_i32_0 : i32, i32
  }
  func.func @transform_2(%arg0: i32, %arg1: i32) -> (i32, i32, i32) {
    %c0_i32 = arith.constant 0 : i32
    %c0_i32_0 = arith.constant 0 : i32
    %c0_i32_1 = arith.constant 0 : i32
    return %arg0, %c0_i32, %c0_i32_0 : i32, i32, i32
  }
  func.func @transform_3(%arg0: i32, %arg1: i32) -> (i32, i32, i32) {
    %c0_i32 = arith.constant 0 : i32
    %c0_i32_0 = arith.constant 0 : i32
    %c0_i32_1 = arith.constant 0 : i32
    return %arg0, %c0_i32, %c0_i32_0 : i32, i32, i32
  }
  func.func @transform_4(%arg0: i32, %arg1: i32) -> (i32, i32) {
    %c0_i32 = arith.constant 0 : i32
    %c0_i32_0 = arith.constant 0 : i32
    %c0_i32_1 = arith.constant 0 : i32
    return %c0_i32, %c0_i32_0 : i32, i32
  }
  func.func @transform_5(%arg0: i32, %arg1: i32) -> (i32, i32, i32) {
    %c0_i32 = arith.constant 0 : i32
    %c0_i32_0 = arith.constant 0 : i32
    return %arg0, %arg1, %c0_i32 : i32, i32, i32
  }
}

</mosaic_0001>

<llo_original>
// kernel: tile.9
$region0: #{tile.9}
  %s0 = inlined_call_operand.vmem [shape: f32[2,9,4], index: 0, kind: input, shape index: {}]
  %s1 = inlined_call_operand.vmem [shape: f32[2,36], index: 1, kind: output, shape index: {}]
  $region1: #{tile.9} parent=0
    #allocation0 [shape = 'u8[4096]{0}', space=vmem, size = 0x1000, scoped, tag = 'scoped mem for output reshape']
    %s2 = smov 3
    %v3 = vld [vmem:[%s0] ss:$16 sm:%s2]
    %vm4 = vcmask 31744
    %5 = vst.msk [vmem:[#allocation0] sm:$0x3] %vm4, %v3
    %s6 = scalar_lea.vmem %s0, 8
    %s7 = smov 3
    %v8 = vld [vmem:[%s6] ss:$16 sm:%s7]
    %9 = vrot.lane.b32.xlu0 %v8, 32
    %v10 = vpop.permute.xlu0 %9
    %vm11 = vcmask 294144
    %12 = vst.msk [vmem:[#allocation0] sm:$0x3] %vm11, %v10
    %s13 = scalar_lea.vmem %s0, 7
    %s14 = smov 3
    %v15 = vld [vmem:[%s13] ss:$16 sm:%s14]
    %16 = vrot.lane.b32.xlu0 %v15, 28
    %v17 = vpop.permute.xlu0 %16
    %vm18 = vcmask 261344
    %19 = vst.msk [vmem:[#allocation0] sm:$0x3] %vm18, %v17
    %s20 = scalar_lea.vmem %s0, 6
    %s21 = smov 3
    %v22 = vld [vmem:[%s20] ss:$16 sm:%s21]
    %23 = vrot.lane.b32.xlu0 %v22, 24
    %v24 = vpop.permute.xlu0 %23
    %vm25 = vcmask 228544
    %26 = vst.msk [vmem:[#allocation0] sm:$0x3] %vm25, %v24
    %s27 = scalar_lea.vmem %s0, 5
    %s28 = smov 3
    %v29 = vld [vmem:[%s27] ss:$16 sm:%s28]
    %30 = vrot.lane.b32.xlu0 %v29, 20
    %v31 = vpop.permute.xlu0 %30
    %vm32 = vcmask 195744
    %33 = vst.msk [vmem:[#allocation0] sm:$0x3] %vm32, %v31
    %s34 = scalar_lea.vmem %s0, 4
    %s35 = smov 3
    %v36 = vld [vmem:[%s34] ss:$16 sm:%s35]
    %37 = vrot.lane.b32.xlu0 %v36, 16
    %v38 = vpop.permute.xlu0 %37
    %vm39 = vcmask 162944
    %40 = vst.msk [vmem:[#allocation0] sm:$0x3] %vm39, %v38
    %s41 = scalar_lea.vmem %s0, 3
    %s42 = smov 3
    %v43 = vld [vmem:[%s41] ss:$16 sm:%s42]
    %44 = vrot.lane.b32.xlu0 %v43, 12
    %v45 = vpop.permute.xlu0 %44
    %vm46 = vcmask 130144
    %47 = vst.msk [vmem:[#allocation0] sm:$0x3] %vm46, %v45
    %s48 = scalar_lea.vmem %s0, 2
    %s49 = smov 3
    %v50 = vld [vmem:[%s48] ss:$16 sm:%s49]
    %51 = vrot.lane.b32.xlu0 %v50, 8
    %v52 = vpop.permute.xlu0 %51
    %vm53 = vcmask 97344
    %54 = vst.msk [vmem:[#allocation0] sm:$0x3] %vm53, %v52
    %s55 = scalar_lea.vmem %s0, 1
    %s56 = smov 3
    %v57 = vld [vmem:[%s55] ss:$16 sm:%s56]
    %58 = vrot.lane.b32.xlu0 %v57, 4
    %v59 = vpop.permute.xlu0 %58
    %vm60 = vcmask 64544
    %61 = vst.msk [vmem:[#allocation0] sm:$0x3] %vm60, %v59
    %s63 = sshllo.u32 0, 2
    %v65 = vld [vmem:[#allocation0] sm:%s63]
    %s66 = sshllo.u32 0, 2
    %67 = vst [vmem:[%s1] sm:%s66] %v65

// kernel: modulated_conv2d.1
$region0: #{modulated_conv2d.1}
  #allocation0 [shape = 'u32[]', space=smem, size = 0x4, offset = 0x4, fixed_abs, tag = 'smem constant byte address 0x4 - core index']
  #allocation1 [shape = 'u32[144,128]{1,0:T(1,128)}', space=vmem, size = 0x12000, scoped, tag = 'internal scratch']
  %s0 = inlined_call_operand.vmem [shape: f32[2,256,128], index: 0, kind: input, shape index: {}]
  %s1 = inlined_call_operand.vmem [shape: f32[128,128], index: 1, kind: input, shape index: {}]
  %s2 = inlined_call_operand.vmem [shape: f32[2,128,1], index: 2, kind: input, shape index: {}]
  %s3 = inlined_call_operand.vmem [shape: f32[2,1,128], index: 3, kind: input, shape index: {}]
  %s4 = inlined_call_operand.vmem [shape: f32[1,128], index: 4, kind: input, shape index: {}]
  %s5 = inlined_call_operand.vmem [shape: f32[2,256,128], index: 5, kind: output, shape index: {}]
  %s6 = sld [smem:[#allocation0]]
  $region53: #{modulated_conv2d.1} parent=0
    _
  %s8 = ssub.s32 1, %s6
  %s9 = scalar_select 0, %s8, %s6
  loop: start=0, step=1, limit=4
  $region2: #{modulated_conv2d.1} parent=0 // loop_pre_header
    _
  $region3: #{modulated_conv2d.1} parent=0 // loop_header
    %s11 = sphi 0, %s15
    %p12 = scmp.ge.s32.totalorder %s11, 4
    %s18 = sphi 0, %s30
    %s19 = sphi 0, %s26
    %s20 = sphi 0, %s18
    %s21 = sphi 0, %s19
    %s22 = sphi 0, %s20
    %s23 = sphi 0, %s21
    %s35 = sphi 0, %s37
    %s38 = sphi 0, %s35
    %s39 = sphi 0, %s38
    %s55 = sphi 0, %s39
    %s59 = sphi 0, %s59
    %s61 = sphi 0, %s59
    %s62 = sphi 0, %s61
    %s76 = sphi 0, %s62
    %s82 = sphi 0, %s84
    %s85 = sphi 0, %s82
    %s86 = sphi 0, %s85
    %s102 = sphi 0, %s86
    %s108 = sphi 0, %s110
    %s111 = sphi 0, %s108
    %s112 = sphi 0, %s111
    %s128 = sphi 0, %s112
    %s132 = sphi 0, %s132
    %s134 = sphi 0, %s132
    %s135 = sphi 0, %s134
    %s149 = sphi 0, %s135
    %s157 = sphi 0, %s159
    %s160 = sphi 0, %s157
    %s161 = sphi 0, %s160
    %s177 = sphi 0, %s161
  $region4: #{modulated_conv2d.1} parent=0 // loop_header_branch
    %14 = sbr.rel (%p12) target = $region8
  $region5: #{modulated_conv2d.1} parent=0 // loop_body
    %s16 = ssub.s32 %s11, 1
    %s17 = ssub.s32 %s11, 2
    %s24 = sadd.s32 1, %s19
    %p25 = scmp.ge.s32.totalorder %s24, 1
    %s26 = scalar_select %p25, 0, %s24
    %s27 = sadd.s32 1, %s18
    %s28 = scalar_select %p25, %s27, %s18
    %p29 = scmp.ge.s32.totalorder %s28, 2
    %s30 = scalar_select %p29, 0, %s28
    %s31 = ssub.s32 %s18, %s30
    %s32 = ssub.s32 %s19, %s26
    %s33 = sor.u32 %s31, %s32
    %p34 = scmp.eq.s32.totalorder %s33, 0
    %s36 = sadd.s32 %s35, 1
    %s37 = scalar_select %p34, %s35, %s36
    %p40 = pneg %p34
    %p41 = scmp.eq.s32.totalorder %s11, 1
    %p42 = por %p40, %p41
    %p43 = scmp.ne.s32.totalorder %s35, %s38
    %p44 = scmp.eq.s32.totalorder %s11, 0
    %p45 = por %p43, %p44
    %p46 = scmp.ne.s32.totalorder %s35, %s38
    %p47 = scmp.eq.s32.totalorder %s16, 1
    %p48 = por %p46, %p47
    %p49 = scmp.ne.s32.totalorder %s38, %s39
    %p50 = scmp.eq.s32.totalorder %s16, 0
    %p51 = por %p49, %p50
    %p52 = scmp.ne.s32.totalorder %s38, %s39
    %p53 = scmp.eq.s32.totalorder %s17, 1
    %p54 = por %p52, %p53
    %p56 = scmp.ne.s32.totalorder %s39, %s55
    %p57 = scmp.eq.s32.totalorder %s17, 0
    %p58 = por %p56, %p57
    %s60 = sadd.s32 %s59, 1
    %p63 = scmp.eq.s32.totalorder %s11, 1
    %p64 = scmp.ne.s32.totalorder %s59, %s61
    %p65 = scmp.eq.s32.totalorder %s11, 0
    %p66 = por %p64, %p65
    %p67 = scmp.ne.s32.totalorder %s59, %s61
    %p68 = scmp.eq.s32.totalorder %s16, 1
    %p69 = por %p67, %p68
    %p70 = scmp.ne.s32.totalorder %s61, %s62
    %p71 = scmp.eq.s32.totalorder %s16, 0
    %p72 = por %p70, %p71
    %p73 = scmp.ne.s32.totalorder %s61, %s62
    %p74 = scmp.eq.s32.totalorder %s17, 1
    %p75 = por %p73, %p74
    %p77 = scmp.ne.s32.totalorder %s62, %s76
    %p78 = scmp.eq.s32.totalorder %s17, 0
    %p79 = por %p77, %p78
    %s80 = ssub.s32 %s18, %s30
    %p81 = scmp.eq.s32.totalorder %s80, 0
    %s83 = sadd.s32 %s82, 1
    %s84 = scalar_select %p81, %s82, %s83
    %p87 = pneg %p81
    %p88 = scmp.eq.s32.totalorder %s11, 1
    %p89 = por %p87, %p88
    %p90 = scmp.ne.s32.totalorder %s82, %s85
    %p91 = scmp.eq.s32.totalorder %s11, 0
    %p92 = por %p90, %p91
    %p93 = scmp.ne.s32.totalorder %s82, %s85
    %p94 = scmp.eq.s32.totalorder %s16, 1
    %p95 = por %p93, %p94
    %p96 = scmp.ne.s32.totalorder %s85, %s86
    %p97 = scmp.eq.s32.totalorder %s16, 0
    %p98 = por %p96, %p97
    %p99 = scmp.ne.s32.totalorder %s85, %s86
    %p100 = scmp.eq.s32.totalorder %s17, 1
    %p101 = por %p99, %p100
    %p103 = scmp.ne.s32.totalorder %s86, %s102
    %p104 = scmp.eq.s32.totalorder %s17, 0
    %p105 = por %p103, %p104
    %s106 = ssub.s32 %s18, %s30
    %p107 = scmp.eq.s32.totalorder %s106, 0
    %s109 = sadd.s32 %s108, 1
    %s110 = scalar_select %p107, %s108, %s109
    %p113 = pneg %p107
    %p114 = scmp.eq.s32.totalorder %s11, 1
    %p115 = por %p113, %p114
    %p116 = scmp.ne.s32.totalorder %s108, %s111
    %p117 = scmp.eq.s32.totalorder %s11, 0
    %p118 = por %p116, %p117
    %p119 = scmp.ne.s32.totalorder %s108, %s111
    %p120 = scmp.eq.s32.totalorder %s16, 1
    %p121 = por %p119, %p120
    %p122 = scmp.ne.s32.totalorder %s111, %s112
    %p123 = scmp.eq.s32.totalorder %s16, 0
    %p124 = por %p122, %p123
    %p125 = scmp.ne.s32.totalorder %s111, %s112
    %p126 = scmp.eq.s32.totalorder %s17, 1
    %p127 = por %p125, %p126
    %p129 = scmp.ne.s32.totalorder %s112, %s128
    %p130 = scmp.eq.s32.totalorder %s17, 0
    %p131 = por %p129, %p130
    %s133 = sadd.s32 %s132, 1
    %p136 = scmp.eq.s32.totalorder %s11, 1
    %p137 = scmp.ne.s32.totalorder %s132, %s134
    %p138 = scmp.eq.s32.totalorder %s11, 0
    %p139 = por %p137, %p138
    %p140 = scmp.ne.s32.totalorder %s132, %s134
    %p141 = scmp.eq.s32.totalorder %s16, 1
    %p142 = por %p140, %p141
    %p143 = scmp.ne.s32.totalorder %s134, %s135
    %p144 = scmp.eq.s32.totalorder %s16, 0
    %p145 = por %p143, %p144
    %p146 = scmp.ne.s32.totalorder %s134, %s135
    %p147 = scmp.eq.s32.totalorder %s17, 1
    %p148 = por %p146, %p147
    %p150 = scmp.ne.s32.totalorder %s135, %s149
    %p151 = scmp.eq.s32.totalorder %s17, 0
    %p152 = por %p150, %p151
    %s153 = ssub.s32 %s18, %s30
    %s154 = ssub.s32 %s19, %s26
    %s155 = sor.u32 %s153, %s154
    %p156 = scmp.eq.s32.totalorder %s155, 0
    %s158 = sadd.s32 %s157, 1
    %s159 = scalar_select %p156, %s157, %s158
    %p162 = pneg %p156
    %p163 = scmp.eq.s32.totalorder %s11, 1
    %p164 = por %p162, %p163
    %p165 = scmp.ne.s32.totalorder %s157, %s160
    %p166 = scmp.eq.s32.totalorder %s11, 0
    %p167 = por %p165, %p166
    %p168 = scmp.ne.s32.totalorder %s157, %s160
    %p169 = scmp.eq.s32.totalorder %s16, 1
    %p170 = por %p168, %p169
    %p171 = scmp.ne.s32.totalorder %s160, %s161
    %p172 = scmp.eq.s32.totalorder %s16, 0
    %p173 = por %p171, %p172
    %p174 = scmp.ne.s32.totalorder %s160, %s161
    %p175 = scmp.eq.s32.totalorder %s17, 1
    %p176 = por %p174, %p175
    %p178 = scmp.ne.s32.totalorder %s161, %s177
    %p179 = scmp.eq.s32.totalorder %s17, 0
    %p180 = por %p178, %p179
    %p181 = scmp.le.s32.totalorder 1, %s11
    %p182 = scmp.lt.s32.totalorder %s11, 3
    %p183 = pnand %p181, %p182
    %p184 = pneg %p183
    // Predicated region
    $region9: #{modulated_conv2d.1} parent=5 // pred_check
      _
    $region10: #{modulated_conv2d.1} parent=5 // pred_check_branch
      %186 = sbr.rel (%p183) target = $region12
    $region11: #{modulated_conv2d.1} parent=5 // pred_region
      %s187 = ssub.s32 %s11, 1
      // Predicated region
      $region13: #{modulated_conv2d.1} parent=11 // pred_check
        %p188 = pneg %p72
      $region14: #{modulated_conv2d.1} parent=11 // pred_check_branch
        %190 = sbr.rel (%p188) target = $region16
      $region15: #{modulated_conv2d.1} parent=11 // pred_region
        _
      $region16: #{modulated_conv2d.1} parent=11 // pred_fallthru
        _
      // Predicated region
      $region17: #{modulated_conv2d.1} parent=11 // pred_check
        %p191 = pneg %p145
      $region18: #{modulated_conv2d.1} parent=11 // pred_check_branch
        %193 = sbr.rel (%p191) target = $region20
      $region19: #{modulated_conv2d.1} parent=11 // pred_region
        _
      $region20: #{modulated_conv2d.1} parent=11 // pred_fallthru
        _
    $region12: #{modulated_conv2d.1} parent=5 // pred_fallthru
      _
    %p194 = scmp.lt.s32.totalorder %s11, 2
    // Predicated region
    $region21: #{modulated_conv2d.1} parent=5 // pred_check
      %p195 = pneg %p194
    $region22: #{modulated_conv2d.1} parent=5 // pred_check_branch
      %197 = sbr.rel (%p195) target = $region24
    $region23: #{modulated_conv2d.1} parent=5 // pred_region
      // Predicated region
      $region25: #{modulated_conv2d.1} parent=23 // pred_check
        %p198 = pneg %p45
      $region26: #{modulated_conv2d.1} parent=23 // pred_check_branch
        %200 = sbr.rel (%p198) target = $region28
      $region27: #{modulated_conv2d.1} parent=23 // pred_region
        %s201 = smul.u32 32, %s19
        %p202 = scmp.lt.s32.totalorder %s18, 1
        %s203 = scalar_select %p202, %s18, 1
        %p204 = scmp.lt.s32.totalorder %s201, 31
        %s205 = scalar_select %p204, %s201, 31
        %s206 = smul.addr %s203, 32
        %s207 = sadd.s32 %s205, %s206
        %s208 = smul.addr %s207, 8
        %s209 = scalar_lea.vmem %s0, %s208
        %s210 = smul.u32 32, %s19
      $region28: #{modulated_conv2d.1} parent=23 // pred_fallthru
        _
      // Predicated region
      $region29: #{modulated_conv2d.1} parent=23 // pred_check
        %p211 = pneg %p92
      $region30: #{modulated_conv2d.1} parent=23 // pred_check_branch
        %213 = sbr.rel (%p211) target = $region32
      $region31: #{modulated_conv2d.1} parent=23 // pred_region
        %p214 = scmp.lt.s32.totalorder %s18, 1
        %s215 = scalar_select %p214, %s18, 1
        %s216 = smul.addr %s215, 16
        %s217 = smul.addr %s216, 8
        %s218 = scalar_lea.vmem %s2, %s217
      $region32: #{modulated_conv2d.1} parent=23 // pred_fallthru
        _
      // Predicated region
      $region33: #{modulated_conv2d.1} parent=23 // pred_check
        %p219 = pneg %p118
      $region34: #{modulated_conv2d.1} parent=23 // pred_check_branch
        %221 = sbr.rel (%p219) target = $region36
      $region35: #{modulated_conv2d.1} parent=23 // pred_region
        %p222 = scmp.lt.s32.totalorder %s18, 1
        %s223 = scalar_select %p222, %s18, 1
        %s224 = scalar_lea.vmem %s3, %s223
      $region36: #{modulated_conv2d.1} parent=23 // pred_fallthru
        _
    $region24: #{modulated_conv2d.1} parent=5 // pred_fallthru
      _
    %p225 = scmp.le.s32.totalorder 1, %s11
    %p226 = scmp.lt.s32.totalorder %s11, 3
    %p227 = pnand %p225, %p226
    %p228 = pneg %p227
    // Predicated region
    $region37: #{modulated_conv2d.1} parent=5 // pred_check
      _
    $region38: #{modulated_conv2d.1} parent=5 // pred_check_branch
      %230 = sbr.rel (%p227) target = $region40
    $region39: #{modulated_conv2d.1} parent=5 // pred_region
      %s231 = ssub.s32 %s11, 1
      %s232 = smul.u32 32, %s21
      %p233 = scmp.lt.s32.totalorder %s20, 1
      %s234 = scalar_select %p233, %s20, 1
      %p235 = scmp.lt.s32.totalorder %s232, 31
      %s236 = scalar_select %p235, %s232, 31
      %s237 = smul.addr %s234, 32
      %s238 = sadd.s32 %s236, %s237
      %s239 = smul.addr %s238, 8
      %s240 = scalar_lea.vmem %s0, %s239
      %p241 = pneg %p51
      %p242 = pneg %p48
      %p243 = pneg %p72
      %p244 = pneg %p69
      %p245 = scmp.lt.s32.totalorder %s20, 1
      %s246 = scalar_select %p245, %s20, 1
      %s247 = smul.addr %s246, 16
      %s248 = smul.addr %s247, 8
      %s249 = scalar_lea.vmem %s2, %s248
      %p250 = pneg %p98
      %p251 = pneg %p95
      %p252 = scmp.lt.s32.totalorder %s20, 1
      %s253 = scalar_select %p252, %s20, 1
      %s254 = scalar_lea.vmem %s3, %s253
      %p255 = pneg %p124
      %p256 = pneg %p121
      %p257 = pneg %p145
      %p258 = pneg %p142
      %p259 = pneg %p173
      %p260 = pneg %p170
      %s261 = smul.u32 32, %s21
      %p262 = scmp.lt.s32.totalorder %s20, 1
      %s263 = scalar_select %p262, %s20, 1
      %p264 = scmp.lt.s32.totalorder %s261, 31
      %s265 = scalar_select %p264, %s261, 31
      %s266 = smul.addr %s263, 32
      %s267 = sadd.s32 %s265, %s266
      %s268 = smul.addr %s267, 8
      %s269 = scalar_lea.vmem %s5, %s268
      %s270 = smul.u32 32, %s21
      %p271 = scmp.lt.s32.totalorder %s20, 1
      %s272 = scalar_select %p271, %s20, 1
      %p273 = scmp.lt.s32.totalorder %s270, 31
      %s274 = scalar_select %p273, %s270, 31
      %s275 = smul.addr %s272, 32
      %s276 = sadd.s32 %s274, %s275
      %s277 = smul.addr %s276, 8
      %s278 = scalar_lea.vmem %s0, %s277
      %s279 = smul.u32 32, %s21
      %p280 = scmp.lt.s32.totalorder %s20, 1
      %s281 = scalar_select %p280, %s20, 1
      %s282 = smul.addr %s281, 16
      %s283 = smul.addr %s282, 8
      %s284 = scalar_lea.vmem %s2, %s283
      %p285 = scmp.lt.s32.totalorder %s20, 1
      %s286 = scalar_select %p285, %s20, 1
      %s287 = scalar_lea.vmem %s3, %s286
      %s288 = smul.u32 32, %s21
      %p289 = scmp.lt.s32.totalorder %s20, 1
      %s290 = scalar_select %p289, %s20, 1
      %p291 = scmp.lt.s32.totalorder %s288, 31
      %s292 = scalar_select %p291, %s288, 31
      %s293 = smul.addr %s290, 32
      %s294 = sadd.s32 %s292, %s293
      %s295 = smul.addr %s294, 8
      %s296 = scalar_lea.vmem %s5, %s295
      %s297 = smul.u32 32, %s21
      %v298 = vld [vmem:[%s1] sm:$0xff]
      %v299 = vld [vmem:[%s1 + $0x8] sm:$0xff]
      %v300 = vld [vmem:[%s1 + $0x10] sm:$0xff]
      %v301 = vld [vmem:[%s1 + $0x18] sm:$0xff]
      %v302 = vld [vmem:[%s1 + $0x20] sm:$0xff]
      %v303 = vld [vmem:[%s1 + $0x28] sm:$0xff]
      %v304 = vld [vmem:[%s1 + $0x30] sm:$0xff]
      %v305 = vld [vmem:[%s1 + $0x38] sm:$0xff]
      %v306 = vld [vmem:[%s1 + $0x40] sm:$0xff]
      %v307 = vld [vmem:[%s1 + $0x48] sm:$0xff]
      %v308 = vld [vmem:[%s1 + $0x50] sm:$0xff]
      %v309 = vld [vmem:[%s1 + $0x58] sm:$0xff]
      %v310 = vld [vmem:[%s1 + $0x60] sm:$0xff]
      %v311 = vld [vmem:[%s1 + $0x68] sm:$0xff]
      %v312 = vld [vmem:[%s1 + $0x70] sm:$0xff]
      %v313 = vld [vmem:[%s1 + $0x78] sm:$0xff]
      %v314 = vld [vmem:[%s284] sm:$0xff]
      %v315 = vld [vmem:[%s284 + $0x8] sm:$0xff]
      %v316 = vld [vmem:[%s284 + $0x10] sm:$0xff]
      %v317 = vld [vmem:[%s284 + $0x18] sm:$0xff]
      %v318 = vld [vmem:[%s284 + $0x20] sm:$0xff]
      %v319 = vld [vmem:[%s284 + $0x28] sm:$0xff]
      %v320 = vld [vmem:[%s284 + $0x30] sm:$0xff]
      %v321 = vld [vmem:[%s284 + $0x38] sm:$0xff]
      %v322 = vld [vmem:[%s284 + $0x40] sm:$0xff]
      %v323 = vld [vmem:[%s284 + $0x48] sm:$0xff]
      %v324 = vld [vmem:[%s284 + $0x50] sm:$0xff]
      %v325 = vld [vmem:[%s284 + $0x58] sm:$0xff]
      %v326 = vld [vmem:[%s284 + $0x60] sm:$0xff]
      %v327 = vld [vmem:[%s284 + $0x68] sm:$0xff]
      %v328 = vld [vmem:[%s284 + $0x70] sm:$0xff]
      %v329 = vld [vmem:[%s284 + $0x78] sm:$0xff]
      %331 = vset.pattern.permute.xlu0 0
      %332 = vperm.xlu0 %331, %v314
      %v333 = vpop.permute.xlu0 %332
      %336 = vset.pattern.permute.xlu0 0
      %337 = vperm.xlu0 %336, %v315
      %v338 = vpop.permute.xlu0 %337
      %341 = vset.pattern.permute.xlu0 0
      %342 = vperm.xlu0 %341, %v316
      %v343 = vpop.permute.xlu0 %342
      %346 = vset.pattern.permute.xlu0 0
      %347 = vperm.xlu0 %346, %v317
      %v348 = vpop.permute.xlu0 %347
      %351 = vset.pattern.permute.xlu0 0
      %352 = vperm.xlu0 %351, %v318
      %v353 = vpop.permute.xlu0 %352
      %356 = vset.pattern.permute.xlu0 0
      %357 = vperm.xlu0 %356, %v319
      %v358 = vpop.permute.xlu0 %357
      %361 = vset.pattern.permute.xlu0 0
      %362 = vperm.xlu0 %361, %v320
      %v363 = vpop.permute.xlu0 %362
      %366 = vset.pattern.permute.xlu0 0
      %367 = vperm.xlu0 %366, %v321
      %v368 = vpop.permute.xlu0 %367
      %371 = vset.pattern.permute.xlu0 0
      %372 = vperm.xlu0 %371, %v322
      %v373 = vpop.permute.xlu0 %372
      %376 = vset.pattern.permute.xlu0 0
      %377 = vperm.xlu0 %376, %v323
      %v378 = vpop.permute.xlu0 %377
      %381 = vset.pattern.permute.xlu0 0
      %382 = vperm.xlu0 %381, %v324
      %v383 = vpop.permute.xlu0 %382
      %386 = vset.pattern.permute.xlu0 0
      %387 = vperm.xlu0 %386, %v325
      %v388 = vpop.permute.xlu0 %387
      %391 = vset.pattern.permute.xlu0 0
      %392 = vperm.xlu0 %391, %v326
      %v393 = vpop.permute.xlu0 %392
      %396 = vset.pattern.permute.xlu0 0
      %397 = vperm.xlu0 %396, %v327
      %v398 = vpop.permute.xlu0 %397
      %401 = vset.pattern.permute.xlu0 0
      %402 = vperm.xlu0 %401, %v328
      %v403 = vpop.permute.xlu0 %402
      %406 = vset.pattern.permute.xlu0 0
      %407 = vperm.xlu0 %406, %v329
      %v408 = vpop.permute.xlu0 %407
      %v410 = vmul.f32 %v298, %v333
      %v411 = vmul.f32 %v299, %v338
      %v412 = vmul.f32 %v300, %v343
      %v413 = vmul.f32 %v301, %v348
      %v414 = vmul.f32 %v302, %v353
      %v415 = vmul.f32 %v303, %v358
      %v416 = vmul.f32 %v304, %v363
      %v417 = vmul.f32 %v305, %v368
      %v418 = vmul.f32 %v306, %v373
      %v419 = vmul.f32 %v307, %v378
      %v420 = vmul.f32 %v308, %v383
      %v421 = vmul.f32 %v309, %v388
      %v422 = vmul.f32 %v310, %v393
      %v423 = vmul.f32 %v311, %v398
      %v424 = vmul.f32 %v312, %v403
      %v425 = vmul.f32 %v313, %v408
      %v426 = vld [vmem:[%s287] sm:$0x1]
      %v428 = vlaneseq
      %v429 = vshrl.u32 %v428, 7
      %v430 = vsub.s32 0, %v429
      %v431 = vrot.slane %v426, %v430
      %v433 = vmul.f32 %v410, %v431
      %v434 = vmul.f32 %v411, %v431
      %v435 = vmul.f32 %v412, %v431
      %v436 = vmul.f32 %v413, %v431
      %v437 = vmul.f32 %v414, %v431
      %v438 = vmul.f32 %v415, %v431
      %v439 = vmul.f32 %v416, %v431
      %v440 = vmul.f32 %v417, %v431
      %v441 = vmul.f32 %v418, %v431
      %v442 = vmul.f32 %v419, %v431
      %v443 = vmul.f32 %v420, %v431
      %v444 = vmul.f32 %v421, %v431
      %v445 = vmul.f32 %v422, %v431
      %v446 = vmul.f32 %v423, %v431
      %v447 = vmul.f32 %v424, %v431
      %v448 = vmul.f32 %v425, %v431
      %v449 = vld [vmem:[%s278] sm:$0xff]
      %v450 = vld [vmem:[%s278 + $0x8] sm:$0xff]
      %v451 = vld [vmem:[%s278 + $0x10] sm:$0xff]
      %v452 = vld [vmem:[%s278 + $0x18] sm:$0xff]
      %v453 = vld [vmem:[%s278 + $0x20] sm:$0xff]
      %v454 = vld [vmem:[%s278 + $0x28] sm:$0xff]
      %v455 = vld [vmem:[%s278 + $0x30] sm:$0xff]
      %v456 = vld [vmem:[%s278 + $0x38] sm:$0xff]
      %v457 = vld [vmem:[%s278 + $0x40] sm:$0xff]
      %v458 = vld [vmem:[%s278 + $0x48] sm:$0xff]
      %v459 = vld [vmem:[%s278 + $0x50] sm:$0xff]
      %v460 = vld [vmem:[%s278 + $0x58] sm:$0xff]
      %v461 = vld [vmem:[%s278 + $0x60] sm:$0xff]
      %v462 = vld [vmem:[%s278 + $0x68] sm:$0xff]
      %v463 = vld [vmem:[%s278 + $0x70] sm:$0xff]
      %v464 = vld [vmem:[%s278 + $0x78] sm:$0xff]
      %v465 = vld [vmem:[%s278 + $0x80] sm:$0xff]
      %v466 = vld [vmem:[%s278 + $0x88] sm:$0xff]
      %v467 = vld [vmem:[%s278 + $0x90] sm:$0xff]
      %v468 = vld [vmem:[%s278 + $0x98] sm:$0xff]
      %v469 = vld [vmem:[%s278 + $0xa0] sm:$0xff]
      %v470 = vld [vmem:[%s278 + $0xa8] sm:$0xff]
      %v471 = vld [vmem:[%s278 + $0xb0] sm:$0xff]
      %v472 = vld [vmem:[%s278 + $0xb8] sm:$0xff]
      %v473 = vld [vmem:[%s278 + $0xc0] sm:$0xff]
      %v474 = vld [vmem:[%s278 + $0xc8] sm:$0xff]
      %v475 = vld [vmem:[%s278 + $0xd0] sm:$0xff]
      %v476 = vld [vmem:[%s278 + $0xd8] sm:$0xff]
      %v477 = vld [vmem:[%s278 + $0xe0] sm:$0xff]
      %v478 = vld [vmem:[%s278 + $0xe8] sm:$0xff]
      %v479 = vld [vmem:[%s278 + $0xf0] sm:$0xff]
      %v480 = vld [vmem:[%s278 + $0xf8] sm:$0xff]
      %v481 = vld [vmem:[%s4] sm:$0x1]
      %v483 = vlaneseq
      %v484 = vshrl.u32 %v483, 7
      %v485 = vsub.s32 0, %v484
      %v486 = vrot.slane %v481, %v485
      %488 = vmatprep.subr.mxu0 0.0
      %489 = vmatpush1.msra.mxu0 %v433
      %490 = vmatprep.subr.mxu0 0.0
      %491 = vmatpush1.msra.mxu0 %v434
      %492 = vmatprep.subr.mxu0 0.0
      %493 = vmatpush1.msra.mxu0 %v435
      %494 = vmatprep.subr.mxu0 0.0
      %495 = vmatpush1.msra.mxu0 %v436
      %496 = vmatprep.subr.mxu0 0.0
      %497 = vmatpush1.msra.mxu0 %v437
      %498 = vmatprep.subr.mxu0 0.0
      %499 = vmatpush1.msra.mxu0 %v438
      %500 = vmatprep.subr.mxu0 0.0
      %501 = vmatpush1.msra.mxu0 %v439
      %502 = vmatprep.subr.mxu0 0.0
      %503 = vmatpush1.msra.mxu0 %v440
      %504 = vmatprep.subr.mxu0 0.0
      %505 = vmatpush1.msra.mxu0 %v441
      %506 = vmatprep.subr.mxu0 0.0
      %507 = vmatpush1.msra.mxu0 %v442
      %508 = vmatprep.subr.mxu0 0.0
      %509 = vmatpush1.msra.mxu0 %v443
      %510 = vmatprep.subr.mxu0 0.0
      %511 = vmatpush1.msra.mxu0 %v444
      %512 = vmatprep.subr.mxu0 0.0
      %513 = vmatpush1.msra.mxu0 %v445
      %514 = vmatprep.subr.mxu0 0.0
      %515 = vmatpush1.msra.mxu0 %v446
      %516 = vmatprep.subr.mxu0 0.0
      %517 = vmatpush1.msra.mxu0 %v447
      %518 = vmatprep.subr.mxu0 0.0
      %519 = vmatpush1.msra.mxu0 %v448
      %520 = vmatprep.subr.mxu0 0.0
      %521 = vmatpush1.msra.mxu0 0.0
      %522 = vmatprep.subr.mxu0 0.0
      %523 = vmatpush1.msra.mxu0 0.0
      %524 = vmatprep.subr.mxu0 0.0
      %525 = vmatpush1.msra.mxu0 0.0
      %526 = vmatprep.subr.mxu0 0.0
      %527 = vmatpush1.msra.mxu0 0.0
      %528 = vmatprep.subr.mxu0 0.0
      %529 = vmatpush1.msra.mxu0 0.0
      %530 = vmatprep.subr.mxu0 0.0
      %531 = vmatpush1.msra.mxu0 0.0
      %532 = vmatprep.subr.mxu0 0.0
      %533 = vmatpush1.msra.mxu0 0.0
      %534 = vmatprep.subr.mxu0 0.0
      %535 = vmatpush1.msra.mxu0 0.0
      %536 = vmatprep.subr.mxu0 0.0
      %537 = vmatpush1.msra.mxu0 0.0
      %538 = vmatprep.subr.mxu0 0.0
      %539 = vmatpush1.msra.mxu0 0.0
      %540 = vmatprep.subr.mxu0 0.0
      %541 = vmatpush1.msra.mxu0 0.0
      %542 = vmatprep.subr.mxu0 0.0
      %543 = vmatpush1.msra.mxu0 0.0
      %544 = vmatprep.subr.mxu0 0.0
      %545 = vmatpush1.msra.mxu0 0.0
      %546 = vmatprep.subr.mxu0 0.0
      %547 = vmatpush1.msra.mxu0 0.0
      %548 = vmatprep.subr.mxu0 0.0
      %549 = vmatpush1.msra.mxu0 0.0
      %550 = vmatprep.subr.mxu0 0.0
      %551 = vmatpush1.msra.mxu0 0.0
      %552 = vmatprep.mubr.f32.mxu0 0.0
      %553 = vmatmul.mubr.f32.gmra.mrb[0].mxu0 %v449
      %v554 = vpop.f32.mrb[0].mxu0
      %v555 = vadd.f32 %v486, %v554
      %v556 = vpop.f32.mrb[0].mxu0
      %557 = vmatprep.mubr.f32.mxu0 0.0
      %558 = vmatmul.mubr.f32.gmra.mrb[0].mxu0 %v450
      %v559 = vpop.f32.mrb[0].mxu0
      %v560 = vadd.f32 %v486, %v559
      %v561 = vpop.f32.mrb[0].mxu0
      %562 = vmatprep.mubr.f32.mxu0 0.0
      %563 = vmatmul.mubr.f32.gmra.mrb[0].mxu0 %v451
      %v564 = vpop.f32.mrb[0].mxu0
      %v565 = vadd.f32 %v486, %v564
      %v566 = vpop.f32.mrb[0].mxu0
      %567 = vmatprep.mubr.f32.mxu0 0.0
      %568 = vmatmul.mubr.f32.gmra.mrb[0].mxu0 %v452
      %v569 = vpop.f32.mrb[0].mxu0
      %v570 = vadd.f32 %v486, %v569
      %v571 = vpop.f32.mrb[0].mxu0
      %572 = vmatprep.mubr.f32.mxu0 0.0
      %573 = vmatmul.mubr.f32.gmra.mrb[0].mxu0 %v453
      %v574 = vpop.f32.mrb[0].mxu0
      %v575 = vadd.f32 %v486, %v574
      %v576 = vpop.f32.mrb[0].mxu0
      %577 = vmatprep.mubr.f32.mxu0 0.0
      %578 = vmatmul.mubr.f32.gmra.mrb[0].mxu0 %v454
      %v579 = vpop.f32.mrb[0].mxu0
      %v580 = vadd.f32 %v486, %v579
      %v581 = vpop.f32.mrb[0].mxu0
      %582 = vmatprep.mubr.f32.mxu0 0.0
      %583 = vmatmul.mubr.f32.gmra.mrb[0].mxu0 %v455
      %v584 = vpop.f32.mrb[0].mxu0
      %v585 = vadd.f32 %v486, %v584
      %v586 = vpop.f32.mrb[0].mxu0
      %587 = vmatprep.mubr.f32.mxu0 0.0
      %588 = vmatmul.mubr.f32.gmra.mrb[0].mxu0 %v456
      %v589 = vpop.f32.mrb[0].mxu0
      %v590 = vadd.f32 %v486, %v589
      %v591 = vpop.f32.mrb[0].mxu0
      %592 = vmatprep.mubr.f32.mxu0 0.0
      %593 = vmatmul.mubr.f32.gmra.mrb[0].mxu0 %v457
      %v594 = vpop.f32.mrb[0].mxu0
      %v595 = vadd.f32 %v486, %v594
      %v596 = vpop.f32.mrb[0].mxu0
      %597 = vmatprep.mubr.f32.mxu0 0.0
      %598 = vmatmul.mubr.f32.gmra.mrb[0].mxu0 %v458
      %v599 = vpop.f32.mrb[0].mxu0
      %v600 = vadd.f32 %v486, %v599
      %v601 = vpop.f32.mrb[0].mxu0
      %602 = vmatprep.mubr.f32.mxu0 0.0
      %603 = vmatmul.mubr.f32.gmra.mrb[0].mxu0 %v459
      %v604 = vpop.f32.mrb[0].mxu0
      %v605 = vadd.f32 %v486, %v604
      %v606 = vpop.f32.mrb[0].mxu0
      %607 = vmatprep.mubr.f32.mxu0 0.0
      %608 = vmatmul.mubr.f32.gmra.mrb[0].mxu0 %v460
      %v609 = vpop.f32.mrb[0].mxu0
      %v610 = vadd.f32 %v486, %v609
      %v611 = vpop.f32.mrb[0].mxu0
      %612 = vmatprep.mubr.f32.mxu0 0.0
      %613 = vmatmul.mubr.f32.gmra.mrb[0].mxu0 %v461
      %v614 = vpop.f32.mrb[0].mxu0
      %v615 = vadd.f32 %v486, %v614
      %v616 = vpop.f32.mrb[0].mxu0
      %617 = vmatprep.mubr.f32.mxu0 0.0
      %618 = vmatmul.mubr.f32.gmra.mrb[0].mxu0 %v462
      %v619 = vpop.f32.mrb[0].mxu0
      %v620 = vadd.f32 %v486, %v619
      %v621 = vpop.f32.mrb[0].mxu0
      %622 = vmatprep.mubr.f32.mxu0 0.0
      %623 = vmatmul.mubr.f32.gmra.mrb[0].mxu0 %v463
      %v624 = vpop.f32.mrb[0].mxu0
      %v625 = vadd.f32 %v486, %v624
      %v626 = vpop.f32.mrb[0].mxu0
      %627 = vmatprep.mubr.f32.mxu0 0.0
      %628 = vmatmul.mubr.f32.gmra.mrb[0].mxu0 %v464
      %v629 = vpop.f32.mrb[0].mxu0
      %v630 = vadd.f32 %v486, %v629
      %v631 = vpop.f32.mrb[0].mxu0
      %632 = vmatprep.mubr.f32.mxu0 0.0
      %633 = vmatmul.mubr.f32.gmra.mrb[0].mxu0 %v465
      %v634 = vpop.f32.mrb[0].mxu0
      %v635 = vadd.f32 %v486, %v634
      %v636 = vpop.f32.mrb[0].mxu0
      %637 = vmatprep.mubr.f32.mxu0 0.0
      %638 = vmatmul.mubr.f32.gmra.mrb[0].mxu0 %v466
      %v639 = vpop.f32.mrb[0].mxu0
      %v640 = vadd.f32 %v486, %v639
      %v641 = vpop.f32.mrb[0].mxu0
      %642 = vmatprep.mubr.f32.mxu0 0.0
      %643 = vmatmul.mubr.f32.gmra.mrb[0].mxu0 %v467
      %v644 = vpop.f32.mrb[0].mxu0
      %v645 = vadd.f32 %v486, %v644
      %v646 = vpop.f32.mrb[0].mxu0
      %647 = vmatprep.mubr.f32.mxu0 0.0
      %648 = vmatmul.mubr.f32.gmra.mrb[0].mxu0 %v468
      %v649 = vpop.f32.mrb[0].mxu0
      %v650 = vadd.f32 %v486, %v649
      %v651 = vpop.f32.mrb[0].mxu0
      %652 = vmatprep.mubr.f32.mxu0 0.0
      %653 = vmatmul.mubr.f32.gmra.mrb[0].mxu0 %v469
      %v654 = vpop.f32.mrb[0].mxu0
      %v655 = vadd.f32 %v486, %v654
      %v656 = vpop.f32.mrb[0].mxu0
      %657 = vmatprep.mubr.f32.mxu0 0.0
      %658 = vmatmul.mubr.f32.gmra.mrb[0].mxu0 %v470
      %v659 = vpop.f32.mrb[0].mxu0
      %v660 = vadd.f32 %v486, %v659
      %v661 = vpop.f32.mrb[0].mxu0
      %662 = vmatprep.mubr.f32.mxu0 0.0
      %663 = vmatmul.mubr.f32.gmra.mrb[0].mxu0 %v471
      %v664 = vpop.f32.mrb[0].mxu0
      %v665 = vadd.f32 %v486, %v664
      %v666 = vpop.f32.mrb[0].mxu0
      %667 = vmatprep.mubr.f32.mxu0 0.0
      %668 = vmatmul.mubr.f32.gmra.mrb[0].mxu0 %v472
      %v669 = vpop.f32.mrb[0].mxu0
      %v670 = vadd.f32 %v486, %v669
      %v671 = vpop.f32.mrb[0].mxu0
      %672 = vmatprep.mubr.f32.mxu0 0.0
      %673 = vmatmul.mubr.f32.gmra.mrb[0].mxu0 %v473
      %v674 = vpop.f32.mrb[0].mxu0
      %v675 = vadd.f32 %v486, %v674
      %v676 = vpop.f32.mrb[0].mxu0
      %677 = vmatprep.mubr.f32.mxu0 0.0
      %678 = vmatmul.mubr.f32.gmra.mrb[0].mxu0 %v474
      %v679 = vpop.f32.mrb[0].mxu0
      %v680 = vadd.f32 %v486, %v679
      %v681 = vpop.f32.mrb[0].mxu0
      %682 = vmatprep.mubr.f32.mxu0 0.0
      %683 = vmatmul.mubr.f32.gmra.mrb[0].mxu0 %v475
      %v684 = vpop.f32.mrb[0].mxu0
      %v685 = vadd.f32 %v486, %v684
      %v686 = vpop.f32.mrb[0].mxu0
      %687 = vmatprep.mubr.f32.mxu0 0.0
      %688 = vmatmul.mubr.f32.gmra.mrb[0].mxu0 %v476
      %v689 = vpop.f32.mrb[0].mxu0
      %v690 = vadd.f32 %v486, %v689
      %v691 = vpop.f32.mrb[0].mxu0
      %692 = vmatprep.mubr.f32.mxu0 0.0
      %693 = vmatmul.mubr.f32.gmra.mrb[0].mxu0 %v477
      %v694 = vpop.f32.mrb[0].mxu0
      %v695 = vadd.f32 %v486, %v694
      %v696 = vpop.f32.mrb[0].mxu0
      %697 = vmatprep.mubr.f32.mxu0 0.0
      %698 = vmatmul.mubr.f32.gmra.mrb[0].mxu0 %v478
      %v699 = vpop.f32.mrb[0].mxu0
      %v700 = vadd.f32 %v486, %v699
      %v701 = vpop.f32.mrb[0].mxu0
      %702 = vmatprep.mubr.f32.mxu0 0.0
      %703 = vmatmul.mubr.f32.gmra.mrb[0].mxu0 %v479
      %v704 = vpop.f32.mrb[0].mxu0
      %v705 = vadd.f32 %v486, %v704
      %v706 = vpop.f32.mrb[0].mxu0
      %707 = vmatprep.mubr.f32.mxu0 0.0
      %708 = vmatmul.mubr.f32.gmra.mrb[0].mxu0 %v480
      %v709 = vpop.f32.mrb[0].mxu0
      %v710 = vadd.f32 %v486, %v709
      %v711 = vpop.f32.mrb[0].mxu0
      %712 = vdwg.mxu0
      %713 = vst [vmem:[%s296] sm:$0xff] %v555
      %714 = vst [vmem:[%s296 + $0x8] sm:$0xff] %v560
      %715 = vst [vmem:[%s296 + $0x10] sm:$0xff] %v565
      %716 = vst [vmem:[%s296 + $0x18] sm:$0xff] %v570
      %717 = vst [vmem:[%s296 + $0x20] sm:$0xff] %v575
      %718 = vst [vmem:[%s296 + $0x28] sm:$0xff] %v580
      %719 = vst [vmem:[%s296 + $0x30] sm:$0xff] %v585
      %720 = vst [vmem:[%s296 + $0x38] sm:$0xff] %v590
      %721 = vst [vmem:[%s296 + $0x40] sm:$0xff] %v595
      %722 = vst [vmem:[%s296 + $0x48] sm:$0xff] %v600
      %723 = vst [vmem:[%s296 + $0x50] sm:$0xff] %v605
      %724 = vst [vmem:[%s296 + $0x58] sm:$0xff] %v610
      %725 = vst [vmem:[%s296 + $0x60] sm:$0xff] %v615
      %726 = vst [vmem:[%s296 + $0x68] sm:$0xff] %v620
      %727 = vst [vmem:[%s296 + $0x70] sm:$0xff] %v625
      %728 = vst [vmem:[%s296 + $0x78] sm:$0xff] %v630
      %729 = vst [vmem:[%s296 + $0x80] sm:$0xff] %v635
      %730 = vst [vmem:[%s296 + $0x88] sm:$0xff] %v640
      %731 = vst [vmem:[%s296 + $0x90] sm:$0xff] %v645
      %732 = vst [vmem:[%s296 + $0x98] sm:$0xff] %v650
      %733 = vst [vmem:[%s296 + $0xa0] sm:$0xff] %v655
      %734 = vst [vmem:[%s296 + $0xa8] sm:$0xff] %v660
      %735 = vst [vmem:[%s296 + $0xb0] sm:$0xff] %v665
      %736 = vst [vmem:[%s296 + $0xb8] sm:$0xff] %v670
      %737 = vst [vmem:[%s296 + $0xc0] sm:$0xff] %v675
      %738 = vst [vmem:[%s296 + $0xc8] sm:$0xff] %v680
      %739 = vst [vmem:[%s296 + $0xd0] sm:$0xff] %v685
      %740 = vst [vmem:[%s296 + $0xd8] sm:$0xff] %v690
      %741 = vst [vmem:[%s296 + $0xe0] sm:$0xff] %v695
      %742 = vst [vmem:[%s296 + $0xe8] sm:$0xff] %v700
      %743 = vst [vmem:[%s296 + $0xf0] sm:$0xff] %v705
      %744 = vst [vmem:[%s296 + $0xf8] sm:$0xff] %v710
      %s745 = smul.u32 32, %s21
      %p746 = scmp.lt.s32.totalorder %s20, 1
      %s747 = scalar_select %p746, %s20, 1
      %p748 = scmp.lt.s32.totalorder %s745, 31
      %s749 = scalar_select %p748, %s745, 31
      %s750 = smul.addr %s747, 32
      %s751 = sadd.s32 %s749, %s750
      %s752 = smul.addr %s751, 8
      %s753 = scalar_lea.vmem %s5, %s752
      // Predicated region
      $region41: #{modulated_conv2d.1} parent=39 // pred_check
        %p754 = pneg %p170
      $region42: #{modulated_conv2d.1} parent=39 // pred_check_branch
        %756 = sbr.rel (%p754) target = $region44
      $region43: #{modulated_conv2d.1} parent=39 // pred_region
        %s757 = smul.u32 32, %s21
      $region44: #{modulated_conv2d.1} parent=39 // pred_fallthru
        _
    $region40: #{modulated_conv2d.1} parent=5 // pred_fallthru
      _
    %p758 = scmp.le.s32.totalorder 2, %s11
    // Predicated region
    $region45: #{modulated_conv2d.1} parent=5 // pred_check
      %p759 = pneg %p758
    $region46: #{modulated_conv2d.1} parent=5 // pred_check_branch
      %761 = sbr.rel (%p759) target = $region48
    $region47: #{modulated_conv2d.1} parent=5 // pred_region
      %s762 = ssub.s32 %s11, 2
      // Predicated region
      $region49: #{modulated_conv2d.1} parent=47 // pred_check
        %p763 = pneg %p176
      $region50: #{modulated_conv2d.1} parent=47 // pred_check_branch
        %765 = sbr.rel (%p763) target = $region52
      $region51: #{modulated_conv2d.1} parent=47 // pred_region
        %s766 = smul.u32 32, %s23
        %p767 = scmp.lt.s32.totalorder %s22, 1
        %s768 = scalar_select %p767, %s22, 1
        %p769 = scmp.lt.s32.totalorder %s766, 31
        %s770 = scalar_select %p769, %s766, 31
        %s771 = smul.addr %s768, 32
        %s772 = sadd.s32 %s770, %s771
        %s773 = smul.addr %s772, 8
        %s774 = scalar_lea.vmem %s5, %s773
      $region52: #{modulated_conv2d.1} parent=47 // pred_fallthru
        _
    $region48: #{modulated_conv2d.1} parent=5 // pred_fallthru
      _
  $region6: #{modulated_conv2d.1} parent=0 // loop_footer
    %s15 = sadd.s32 1, %s11
  $region7: #{modulated_conv2d.1} parent=0 // loop_footer_branch
    %10 = sbr.rel target = $region3
  $region8: #{modulated_conv2d.1} parent=0 // loop_exit
    _

</llo_original>
